<compile_context>
chip_gen: v6e
topology: v6e:2x2x1
jax: 0.10.0
libtpu: 0.0.40
codegen_flags: <defaults>
</compile_context>

<pallas_src>
import jax
import jax.numpy as jnp
from jax.experimental import pallas as pl
from jax.experimental.pallas import tpu as pltpu


# ------------------------------ helpers --------------------------------------
def _round_up(x, m):
    return (x + m - 1) // m * m


def _num_tensorcores():
    # v7x has 2 TensorCores per chip; v5e / v6e have 1.
    try:
        kind = jax.devices()[0].device_kind.lower()
    except Exception:
        return 1
    return 2 if ("v7" in kind or "7x" in kind) else 1


_INV_SQRT2 = 0.7071067811865476


def _erf_approx(u):
    # Abramowitz & Stegun 7.1.26 (|abs err| < 1.5e-7). The divide is moved to
    # the EUP reciprocal slot (approx vrcp) so it does not consume VALU issue.
    a1, a2, a3, a4, a5 = (0.254829592, -0.284496736, 1.421413741,
                          -1.453152027, 1.061405429)
    pc = 0.3275911
    sgn = jnp.where(u >= 0.0, 1.0, -1.0)
    z = jnp.abs(u)
    t = pl.reciprocal(1.0 + pc * z, approx=True)
    poly = ((((a5 * t + a4) * t + a3) * t + a2) * t + a1) * t
    return sgn * (1.0 - poly * jnp.exp(-z * z))


def _gelu_erf(x):
    # matches torch.nn.GELU() (erf formulation) to ~1e-4 (approx reciprocal)
    return 0.5 * x * (1.0 + _erf_approx(x * _INV_SQRT2))


# ------------------------------ Pallas kernel ---------------------------------
def _mlp_kernel(x_ref, w1_ref, b1_ref, w2_ref, b2_ref, o_ref, acc_ref):
    # Fused per (row-tile i, hidden-chunk k):
    #   h_k = GELU(x @ W1[:, k] + b1[k])          (bf16 MXU, f32 epilogue)
    #   acc += h_k @ W2[k, :]                     (bf16 MXU, f32 accumulate)
    # dropout p=0 -> identity.
    k = pl.program_id(1)

    @pl.when(k == 0)
    def _():
        acc_ref[...] = jnp.zeros_like(acc_ref)

    h = jnp.dot(
        x_ref[...].astype(jnp.bfloat16),
        w1_ref[...],
        preferred_element_type=jnp.float32,
    )
    h = _gelu_erf(h + b1_ref[...])

    acc_ref[...] += jnp.dot(
        h.astype(jnp.bfloat16),
        w2_ref[...],
        preferred_element_type=jnp.float32,
    )

    @pl.when(k == pl.num_programs(1) - 1)
    def _():
        o_ref[...] = (acc_ref[...] + b2_ref[...]).astype(o_ref.dtype)


def mlp_forward(x, w1, b1, w2, b2):
    """y = GELU(x @ w1 + b1) @ w2 + b2 over the last dim of x (any leading dims)."""
    orig_shape = x.shape
    d_in, d_hid = w1.shape
    d_out = w2.shape[1]
    out_dtype = x.dtype

    m = 1
    for s in orig_shape[:-1]:
        m *= s
    x2 = x.reshape(m, d_in)  # no dtype cast here: kernel casts to bf16 in VMEM

    # ---- row (M) tiling -------------------------------------------------
    m_pad = _round_up(m, 8)
    n_tc = _num_tensorcores()
    if m_pad <= 512 * n_tc:
        # single step on 1-TC chips; >=2 steps on v7x so both cores get rows
        tm = _round_up(-(-m_pad // n_tc), 8)
    else:
        tm = 512
    m_pad = _round_up(m_pad, tm)
    if m_pad != m:
        # only pays when rows are not tile-aligned (padded rows sliced off below)
        x2 = jnp.pad(x2, ((0, m_pad - m), (0, 0)))

    # ---- hidden (K) tiling ----------------------------------------------
    tk = min(512, _round_up(d_hid, 128))        # 128-aligned (v5e), 512 -> 256-aligned (v6e/v7x)
    d_hid_pad = _round_up(d_hid, tk)

    # ---- lane-dense output ----------------------------------------------
    d_out_pad = _round_up(d_out, 128)

    # ---- weight / bias prep (bf16 weights for the MXU, f32 biases) -------
    w1p = w1.astype(jnp.bfloat16)
    b1p = b1.reshape(1, d_hid).astype(jnp.float32)
    w2p = w2.astype(jnp.bfloat16)
    b2p = b2.reshape(1, d_out).astype(jnp.float32)
    if d_hid_pad != d_hid:
        w1p = jnp.pad(w1p, ((0, 0), (0, d_hid_pad - d_hid)))
        b1p = jnp.pad(b1p, ((0, 0), (0, d_hid_pad - d_hid)))
        w2p = jnp.pad(w2p, ((0, d_hid_pad - d_hid), (0, 0)))
    if d_out_pad != d_out:
        w2p = jnp.pad(w2p, ((0, 0), (0, d_out_pad - d_out)))
        b2p = jnp.pad(b2p, ((0, 0), (0, d_out_pad - d_out)))

    grid = (m_pad // tm, d_hid_pad // tk)

    # ---- explicit VMEM budget (double-buffered tiles + acc + GELU temps) --
    xbytes = x2.dtype.itemsize
    obytes = jnp.dtype(out_dtype).itemsize
    vmem_bytes = (
        2 * tm * d_in * xbytes          # x tile
        + 2 * d_in * tk * 2             # W1 chunk (bf16)
        + 2 * tk * 4                    # b1 chunk
        + 2 * tk * d_out_pad * 2        # W2 chunk (bf16)
        + 2 * d_out_pad * 4             # b2
        + 2 * tm * d_out_pad * obytes   # out tile
        + tm * d_out_pad * 4            # f32 accumulator scratch
        + 8 * tm * tk * 4               # hidden slab + GELU temporaries
        + (4 << 20)                     # headroom / internal scratch
    )
    vmem_limit = int(min(max(vmem_bytes, 32 << 20), 64 << 20))  # v7x-safe cap

    out = pl.pallas_call(
        _mlp_kernel,
        out_shape=jax.ShapeDtypeStruct((m_pad, d_out_pad), out_dtype),
        grid=grid,
        in_specs=[
            pl.BlockSpec((tm, d_in), lambda i, k: (i, 0)),          # x rows
            pl.BlockSpec((d_in, tk), lambda i, k: (0, k)),          # W1 chunk
            pl.BlockSpec((1, tk), lambda i, k: (0, k)),             # b1 chunk
            pl.BlockSpec((tk, d_out_pad), lambda i, k: (k, 0)),     # W2 chunk
            pl.BlockSpec((1, d_out_pad), lambda i, k: (0, 0)),      # b2 (resident)
        ],
        out_specs=pl.BlockSpec((tm, d_out_pad), lambda i, k: (i, 0)),
        scratch_shapes=[pltpu.VMEM((tm, d_out_pad), jnp.float32)],
        compiler_params=pltpu.CompilerParams(
            dimension_semantics=("parallel", "arbitrary"),
            vmem_limit_bytes=vmem_limit,
        ),
    )(x2, w1p, b1p, w2p, b2p)

    return out[:m, :d_out].reshape(*orig_shape[:-1], d_out)


# --------------------------------- main ---------------------------------------
if __name__ == "__main__":
    key = jax.random.PRNGKey(0)
    kx, k1, k2, k3, k4 = jax.random.split(key, 5)

    B, S = 2, 8
    IN_F = 32
    HID_F = int(IN_F * 4.0)   # hidden_features = in_features * mlp_ratio
    OUT_F = IN_F              # out_features defaults to in_features

    x = jax.random.normal(kx, (B, S, IN_F), jnp.float32)
    w1 = 0.02 * jax.random.normal(k1, (IN_F, HID_F), jnp.float32)
    b1 = 0.02 * jax.random.normal(k2, (HID_F,), jnp.float32)
    w2 = 0.02 * jax.random.normal(k3, (HID_F, OUT_F), jnp.float32)
    b2 = 0.02 * jax.random.normal(k4, (OUT_F,), jnp.float32)

    out = mlp_forward(x, w1, b1, w2, b2)
    out = jax.block_until_ready(out)

    # pure-JAX f32 reference (dropout p=0.0 -> identity; exact erf GELU).
    # Tolerance reflects bf16 MXU operands (f32 accumulation) in the kernel.
    ref = jax.nn.gelu(x @ w1 + b1, approximate=False) @ w2 + b2

    assert out.shape == (B, S, OUT_F)
    assert bool(jnp.all(jnp.isfinite(out)))
    assert bool(jnp.allclose(out, ref, atol=3e-3, rtol=3e-2))
    print("KERNEL_OK")
</pallas_src>

<mosaic_0001>
module attributes {stable_mosaic.version = 11 : i64} {
  func.func @_mlp_kernel(%arg0: i32, %arg1: i32, %arg2: memref<16x32xf32, #tpu.memory_space<vmem>>, %arg3: memref<32x128xbf16, #tpu.memory_space<vmem>>, %arg4: memref<1x128xf32, #tpu.memory_space<vmem>>, %arg5: memref<128x128xbf16, #tpu.memory_space<vmem>>, %arg6: memref<1x128xf32, #tpu.memory_space<vmem>>, %arg7: memref<16x128xf32, #tpu.memory_space<vmem>>, %arg8: memref<16x128xf32, #tpu.memory_space<vmem>>) attributes {dimension_semantics = [#tpu.dimension_semantics<parallel>, #tpu.dimension_semantics<arbitrary>], iteration_bounds = array<i64: 1, 1>, scalar_prefetch = 0 : i64, scratch_operands = 1 : i64, tpu.core_type = #tpu.core_type<tc>, window_params = [{transform_indices = @transform_0, window_bounds = array<i64: 16, 32>}, {transform_indices = @transform_1, window_bounds = array<i64: 32, 128>}, {transform_indices = @transform_2, window_bounds = array<i64: 1, 128>}, {transform_indices = @transform_3, window_bounds = array<i64: 128, 128>}, {pipeline_mode = #tpu.pipeline_mode<synchronous>, transform_indices = @transform_4, window_bounds = array<i64: 1, 128>}, {transform_indices = @transform_5, window_bounds = array<i64: 16, 128>}]} {
    %c0_i32 = arith.constant 0 : i32
    %0 = arith.cmpi eq, %arg1, %c0_i32 : i32
    %1 = arith.extui %0 : i1 to i32
    %c0_i32_0 = arith.constant 0 : i32
    %2 = arith.cmpi ne, %1, %c0_i32_0 : i32
    scf.if %2 {
      %cst_30 = arith.constant 0.000000e+00 : f32
      %59 = vector.broadcast %cst_30 : f32 to vector<16x128xf32>
      %c0_31 = arith.constant 0 : index
      %c0_32 = arith.constant 0 : index
      %60 = vector.load %arg8[%c0_31, %c0_32] : memref<16x128xf32, #tpu.memory_space<vmem>>, vector<16x128xf32>
      tpu.vector_store %arg8[%c0_31, %c0_32], %59 {strides = array<i32>} : memref<16x128xf32, #tpu.memory_space<vmem>>, vector<16x128xf32>,
    } else {
    }
    %c0 = arith.constant 0 : index
    %c0_1 = arith.constant 0 : index
    %3 = vector.load %arg2[%c0, %c0_1] : memref<16x32xf32, #tpu.memory_space<vmem>>, vector<16x32xf32>
    %4 = arith.truncf %3 : vector<16x32xf32> to vector<16x32xbf16>
    %c0_2 = arith.constant 0 : index
    %c0_3 = arith.constant 0 : index
    %5 = vector.load %arg3[%c0_2, %c0_3] : memref<32x128xbf16, #tpu.memory_space<vmem>>, vector<32x128xbf16>
    %cst = arith.constant dense<0.000000e+00> : vector<16x128xf32>
    %6 = tpu.matmul %4, %5, %cst {dimension_numbers = #tpu.dot_dimension_numbers<[1], [0], [0], [1], [0, 0, 1, 1], [], []>} : vector<16x32xbf16>, vector<32x128xbf16>, vector<16x128xf32> -> vector<16x128xf32>
    %c0_4 = arith.constant 0 : index
    %c0_5 = arith.constant 0 : index
    %7 = vector.load %arg4[%c0_4, %c0_5] : memref<1x128xf32, #tpu.memory_space<vmem>>, vector<1x128xf32>
    %8 = vector.broadcast %7 : vector<1x128xf32> to vector<16x128xf32>
    %9 = arith.addf %6, %8 : vector<16x128xf32>
    %cst_6 = arith.constant 5.000000e-01 : f32
    %10 = vector.broadcast %cst_6 : f32 to vector<16x128xf32>
    %11 = arith.mulf %10, %9 : vector<16x128xf32>
    %cst_7 = arith.constant 0.707106769 : f32
    %12 = vector.broadcast %cst_7 : f32 to vector<16x128xf32>
    %13 = arith.mulf %9, %12 : vector<16x128xf32>
    %cst_8 = arith.constant 0.000000e+00 : f32
    %14 = vector.broadcast %cst_8 : f32 to vector<16x128xf32>
    %15 = arith.cmpf oge, %13, %14 : vector<16x128xf32>
    %cst_9 = arith.constant 1.000000e+00 : f32
    %cst_10 = arith.constant -1.000000e+00 : f32
    %16 = vector.broadcast %cst_9 : f32 to vector<16x128xf32>
    %17 = vector.broadcast %cst_10 : f32 to vector<16x128xf32>
    %18 = arith.select %15, %16, %17 : vector<16x128xi1>, vector<16x128xf32>
    %19 = math.absf %13 : vector<16x128xf32>
    %cst_11 = arith.constant 0.327591091 : f32
    %20 = vector.broadcast %cst_11 : f32 to vector<16x128xf32>
    %21 = arith.mulf %20, %19 : vector<16x128xf32>
    %cst_12 = arith.constant 1.000000e+00 : f32
    %22 = vector.broadcast %cst_12 : f32 to vector<16x128xf32>
    %23 = arith.addf %22, %21 : vector<16x128xf32>
    %24 = tpu.reciprocal %23 {approx = true} : vector<16x128xf32> -> vector<16x128xf32>
    %cst_13 = arith.constant 1.06140542 : f32
    %25 = vector.broadcast %cst_13 : f32 to vector<16x128xf32>
    %26 = arith.mulf %25, %24 : vector<16x128xf32>
    %cst_14 = arith.constant -1.45315206 : f32
    %27 = vector.broadcast %cst_14 : f32 to vector<16x128xf32>
    %28 = arith.addf %26, %27 : vector<16x128xf32>
    %29 = arith.mulf %28, %24 : vector<16x128xf32>
    %cst_15 = arith.constant 1.42141378 : f32
    %30 = vector.broadcast %cst_15 : f32 to vector<16x128xf32>
    %31 = arith.addf %29, %30 : vector<16x128xf32>
    %32 = arith.mulf %31, %24 : vector<16x128xf32>
    %cst_16 = arith.constant -0.284496725 : f32
    %33 = vector.broadcast %cst_16 : f32 to vector<16x128xf32>
    %34 = arith.addf %32, %33 : vector<16x128xf32>
    %35 = arith.mulf %34, %24 : vector<16x128xf32>
    %cst_17 = arith.constant 0.254829586 : f32
    %36 = vector.broadcast %cst_17 : f32 to vector<16x128xf32>
    %37 = arith.addf %35, %36 : vector<16x128xf32>
    %38 = arith.mulf %37, %24 : vector<16x128xf32>
    %cst_18 = arith.constant 0.000000e+00 : f32
    %39 = vector.broadcast %cst_18 : f32 to vector<16x128xf32>
    %40 = arith.subf %39, %19 : vector<16x128xf32>
    %41 = arith.mulf %40, %19 : vector<16x128xf32>
    %42 = math.exp %41 : vector<16x128xf32>
    %43 = arith.mulf %38, %42 : vector<16x128xf32>
    %cst_19 = arith.constant 1.000000e+00 : f32
    %44 = vector.broadcast %cst_19 : f32 to vector<16x128xf32>
    %45 = arith.subf %44, %43 : vector<16x128xf32>
    %46 = arith.mulf %18, %45 : vector<16x128xf32>
    %cst_20 = arith.constant 1.000000e+00 : f32
    %47 = vector.broadcast %cst_20 : f32 to vector<16x128xf32>
    %48 = arith.addf %47, %46 : vector<16x128xf32>
    %49 = arith.mulf %11, %48 : vector<16x128xf32>
    %c0_21 = arith.constant 0 : index
    %c0_22 = arith.constant 0 : index
    %50 = vector.load %arg8[%c0_21, %c0_22] : memref<16x128xf32, #tpu.memory_space<vmem>>, vector<16x128xf32>
    %51 = arith.truncf %49 : vector<16x128xf32> to vector<16x128xbf16>
    %c0_23 = arith.constant 0 : index
    %c0_24 = arith.constant 0 : index
    %52 = vector.load %arg5[%c0_23, %c0_24] : memref<128x128xbf16, #tpu.memory_space<vmem>>, vector<128x128xbf16>
    %cst_25 = arith.constant dense<0.000000e+00> : vector<16x128xf32>
    %53 = tpu.matmul %51, %52, %cst_25 {dimension_numbers = #tpu.dot_dimension_numbers<[1], [0], [0], [1], [0, 0, 1, 1], [], []>} : vector<16x128xbf16>, vector<128x128xbf16>, vector<16x128xf32> -> vector<16x128xf32>
    %54 = arith.addf %50, %53 : vector<16x128xf32>
    %c0_26 = arith.constant 0 : index
    %c0_27 = arith.constant 0 : index
    %55 = vector.load %arg8[%c0_26, %c0_27] : memref<16x128xf32, #tpu.memory_space<vmem>>, vector<16x128xf32>
    tpu.vector_store %arg8[%c0_26, %c0_27], %54 {strides = array<i32>} : memref<16x128xf32, #tpu.memory_space<vmem>>, vector<16x128xf32>,
    %c0_i32_28 = arith.constant 0 : i32
    %56 = arith.cmpi eq, %arg1, %c0_i32_28 : i32
    %57 = arith.extui %56 : i1 to i32
    %c0_i32_29 = arith.constant 0 : i32
    %58 = arith.cmpi ne, %57, %c0_i32_29 : i32
    scf.if %58 {
      %c0_30 = arith.constant 0 : index
      %c0_31 = arith.constant 0 : index
      %59 = vector.load %arg8[%c0_30, %c0_31] : memref<16x128xf32, #tpu.memory_space<vmem>>, vector<16x128xf32>
      %c0_32 = arith.constant 0 : index
      %c0_33 = arith.constant 0 : index
      %60 = vector.load %arg6[%c0_32, %c0_33] : memref<1x128xf32, #tpu.memory_space<vmem>>, vector<1x128xf32>
      %61 = vector.broadcast %60 : vector<1x128xf32> to vector<16x128xf32>
      %62 = arith.addf %59, %61 : vector<16x128xf32>
      %c0_34 = arith.constant 0 : index
      %c0_35 = arith.constant 0 : index
      %63 = vector.load %arg7[%c0_34, %c0_35] : memref<16x128xf32, #tpu.memory_space<vmem>>, vector<16x128xf32>
      tpu.vector_store %arg7[%c0_34, %c0_35], %62 {strides = array<i32>} : memref<16x128xf32, #tpu.memory_space<vmem>>, vector<16x128xf32>,
    } else {
    }
    return
  }
  func.func @transform_0(%arg0: i32, %arg1: i32) -> (i32, i32) {
    %c0_i32 = arith.constant 0 : i32
    %c0_i32_0 = arith.constant 0 : i32
    return %arg0, %c0_i32 : i32, i32
  }
  func.func @transform_1(%arg0: i32, %arg1: i32) -> (i32, i32) {
    %c0_i32 = arith.constant 0 : i32
    %c0_i32_0 = arith.constant 0 : i32
    return %c0_i32, %arg1 : i32, i32
  }
  func.func @transform_2(%arg0: i32, %arg1: i32) -> (i32, i32) {
    %c0_i32 = arith.constant 0 : i32
    %c0_i32_0 = arith.constant 0 : i32
    return %c0_i32, %arg1 : i32, i32
  }
  func.func @transform_3(%arg0: i32, %arg1: i32) -> (i32, i32) {
    %c0_i32 = arith.constant 0 : i32
    %c0_i32_0 = arith.constant 0 : i32
    return %arg1, %c0_i32 : i32, i32
  }
  func.func @transform_4(%arg0: i32, %arg1: i32) -> (i32, i32) {
    %c0_i32 = arith.constant 0 : i32
    %c0_i32_0 = arith.constant 0 : i32
    %c0_i32_1 = arith.constant 0 : i32
    return %c0_i32, %c0_i32_0 : i32, i32
  }
  func.func @transform_5(%arg0: i32, %arg1: i32) -> (i32, i32) {
    %c0_i32 = arith.constant 0 : i32
    %c0_i32_0 = arith.constant 0 : i32
    return %arg0, %c0_i32 : i32, i32
  }
}

</mosaic_0001>

<llo_original>
// kernel: tpu_custom_call.1
$region0: #{tpu_custom_call.1}
  #allocation0 [shape = 'u32[]', space=smem, size = 0x4, offset = 0x4, fixed_abs, tag = 'smem constant byte address 0x4 - core index']
  #allocation1 [shape = 'u32[144,128]{1,0:T(1,128)}', space=vmem, size = 0x12000, scoped, tag = 'internal scratch']
  #allocation2 [shape = 'f32[16,128]{1,0:T(8,128)}', space=vmem, size = 0x2000, scoped, tag = 'scratch operand']
  %s0 = inlined_call_operand.hbm [shape: f32[16,32], index: 0, kind: input, shape index: {}]
  %s1 = inlined_call_operand.hbm [shape: bf16[32,128], index: 1, kind: input, shape index: {}]
  %s2 = inlined_call_operand.vmem [shape: f32[1,128], index: 2, kind: input, shape index: {}]
  %s3 = inlined_call_operand.hbm [shape: bf16[128,128], index: 3, kind: input, shape index: {}]
  %s4 = inlined_call_operand.vmem [shape: f32[1,128], index: 4, kind: input, shape index: {}]
  %s5 = inlined_call_operand.hbm [shape: f32[16,128], index: 5, kind: output, shape index: {}]
  %s6 = sld [smem:[#allocation0]]
  $region50: #{tpu_custom_call.1} parent=0
    _
  %s8 = ssub.s32 1, %s6
  %s9 = scalar_select 0, %s8, %s6
  $region1: #{tpu_custom_call.1} parent=0
    #allocation3 [shape = 'u8[8192]{0}', space=vmem, size = 0x2000, scoped, tag = 'input window, operand 0, single buffered']
    #allocation4 [shape = 's32[1]{0}', space=sflag, size = 0x4, scoped, tag = 'scoped memory for tpu_custom_call.1']
    #allocation5 [shape = 's32[1]{0}', space=sflag, size = 0x4, scoped, tag = 'scoped memory for tpu_custom_call.1']
    #allocation6 [shape = 'u8[8192]{0}', space=vmem, size = 0x2000, scoped, tag = 'input window, operand 1, single buffered']
    #allocation7 [shape = 's32[1]{0}', space=sflag, size = 0x4, scoped, tag = 'scoped memory for tpu_custom_call.1']
    #allocation8 [shape = 'u8[32768]{0}', space=vmem, size = 0x8000, scoped, tag = 'input window, operand 3, single buffered']
    #allocation9 [shape = 'u8[8192]{0}', space=vmem, size = 0x2000, scoped, tag = 'output window, operand 0, single buffered']
    %10 = vsyncpa [#allocation4], 0
    %11 = vsyncpa [#allocation7], 0
    %12 = vsyncpa [#allocation5], 0
    // Predicated region
    $region2: #{tpu_custom_call.1} parent=1 // pred_check
      _
    $region3: #{tpu_custom_call.1} parent=1 // pred_check_branch
      %14 = sbr.rel (0) target = $region5
    $region4: #{tpu_custom_call.1} parent=1 // pred_region
      %s16 = ssub.s32 256, 256
      %17 = vsyncadd [#allocation4], %s16
      %s18 = sshll.u32 [#allocation3], 4
      %s19 = int_to_ptr.vmem [resolvable:$true] %s18
      %24 = dma.hbm_to_vmem [thread:$0]  %s0, 256, %s19, [#allocation4], 128, 128, 8
    $region5: #{tpu_custom_call.1} parent=1 // pred_fallthru
      _
    // Predicated region
    $region6: #{tpu_custom_call.1} parent=1 // pred_check
      _
    $region7: #{tpu_custom_call.1} parent=1 // pred_check_branch
      %26 = sbr.rel (0) target = $region9
    $region8: #{tpu_custom_call.1} parent=1 // pred_region
      %s28 = ssub.s32 256, 256
      %29 = vsyncadd [#allocation7], %s28
      %s30 = sshll.u32 [#allocation6], 4
      %s31 = int_to_ptr.vmem [resolvable:$true] %s30
      %36 = dma.hbm_to_vmem [thread:$0]  %s1, 256, %s31, [#allocation7], 64, 64, 4
    $region9: #{tpu_custom_call.1} parent=1 // pred_fallthru
      _
    // Predicated region
    $region10: #{tpu_custom_call.1} parent=1 // pred_check
      _
    $region11: #{tpu_custom_call.1} parent=1 // pred_check_branch
      %38 = sbr.rel (0) target = $region13
    $region12: #{tpu_custom_call.1} parent=1 // pred_region
      _
    $region13: #{tpu_custom_call.1} parent=1 // pred_fallthru
      _
    // Predicated region
    $region14: #{tpu_custom_call.1} parent=1 // pred_check
      _
    $region15: #{tpu_custom_call.1} parent=1 // pred_check_branch
      %40 = sbr.rel (0) target = $region17
    $region16: #{tpu_custom_call.1} parent=1 // pred_region
      %s42 = ssub.s32 1024, 1024
      %43 = vsyncadd [#allocation7], %s42
      %s44 = sshll.u32 [#allocation8], 4
      %s45 = int_to_ptr.vmem [resolvable:$true] %s44
      %50 = dma.hbm_to_vmem [thread:$0]  %s3, 1024, %s45, [#allocation7], 64, 64, 4
    $region17: #{tpu_custom_call.1} parent=1 // pred_fallthru
      _
    // Predicated region
    $region18: #{tpu_custom_call.1} parent=1 // pred_check
      _
    $region19: #{tpu_custom_call.1} parent=1 // pred_check_branch
      %52 = sbr.rel (0) target = $region21
    $region20: #{tpu_custom_call.1} parent=1 // pred_region
      _
    $region21: #{tpu_custom_call.1} parent=1 // pred_fallthru
      _
    // Predicated region
    $region22: #{tpu_custom_call.1} parent=1 // pred_check
      _
    $region23: #{tpu_custom_call.1} parent=1 // pred_check_branch
      %54 = sbr.rel (0) target = $region25
    $region24: #{tpu_custom_call.1} parent=1 // pred_region
      %55 = dma.done [#allocation4], 256
    $region25: #{tpu_custom_call.1} parent=1 // pred_fallthru
      _
    // Predicated region
    $region26: #{tpu_custom_call.1} parent=1 // pred_check
      _
    $region27: #{tpu_custom_call.1} parent=1 // pred_check_branch
      %57 = sbr.rel (0) target = $region29
    $region28: #{tpu_custom_call.1} parent=1 // pred_region
      %58 = dma.done [#allocation7], 256
    $region29: #{tpu_custom_call.1} parent=1 // pred_fallthru
      _
    // Predicated region
    $region30: #{tpu_custom_call.1} parent=1 // pred_check
      _
    $region31: #{tpu_custom_call.1} parent=1 // pred_check_branch
      %60 = sbr.rel (0) target = $region33
    $region32: #{tpu_custom_call.1} parent=1 // pred_region
      %61 = dma.done [#allocation7], 1024
    $region33: #{tpu_custom_call.1} parent=1 // pred_fallthru
      _
    %p63 = scmp.eq.s32.totalorder 0, 0
    // Predicated region
    $region34: #{tpu_custom_call.1} parent=1 // pred_check
      %p64 = pneg %p63
    $region35: #{tpu_custom_call.1} parent=1 // pred_check_branch
      %66 = sbr.rel (%p64) target = $region37
    $region36: #{tpu_custom_call.1} parent=1 // pred_region
      %67 = vst [vmem:[#allocation2] sm:$0xff] 0.0
      %68 = vst [vmem:[#allocation2 + $0x8] sm:$0xff] 0.0
    $region37: #{tpu_custom_call.1} parent=1 // pred_fallthru
      _
    %v69 = vld [vmem:[#allocation3] sm:$0xff]
    %v70 = vld [vmem:[#allocation3 + $0x8] sm:$0xff]
    %v71 = vpack.c.bf16 %v70, %v69
    %v72 = vld [vmem:[#allocation6] sm:$0xf]
    %v73 = vld [vmem:[#allocation6 + $0x4] sm:$0xf]
    %v74 = vld [vmem:[#allocation6 + $0x8] sm:$0xf]
    %v75 = vld [vmem:[#allocation6 + $0xc] sm:$0xf]
    %v76 = vld [vmem:[%s2] sm:$0x1]
    %v78 = vlaneseq
    %v79 = vshrl.u32 %v78, 7
    %v80 = vsub.s32 0, %v79
    %v81 = vrot.slane %v76, %v80
    %v87 = vunpack.c.l.b16 %v72
    %v88 = vunpack.c.l.b16 %v73
    %v89 = vunpack.c.l.b16 %v74
    %v90 = vunpack.c.l.b16 %v75
    %v91 = vpack.c.b16 %v88, %v87
    %v92 = vpack.c.b16 %v90, %v89
    %vm95 = vcmask 261120
    %v97 = vsel %vm95, %v71, 0
    %99 = vmatprep.subr.bf16.mxu0 0
    %100 = vmatpush1.bf16.msra.mxu0 0
    %101 = vmatprep.subr.bf16.mxu0 0
    %102 = vmatpush1.bf16.msra.mxu0 0
    %103 = vmatprep.subr.bf16.mxu0 0
    %104 = vmatpush1.bf16.msra.mxu0 0
    %105 = vmatprep.subr.bf16.mxu0 0
    %106 = vmatpush1.bf16.msra.mxu0 0
    %107 = vmatprep.subr.bf16.mxu0 0
    %108 = vmatpush1.bf16.msra.mxu0 0
    %109 = vmatprep.subr.bf16.mxu0 0
    %110 = vmatpush1.bf16.msra.mxu0 0
    %111 = vmatprep.subr.bf16.mxu0 0
    %112 = vmatpush1.bf16.msra.mxu0 %v92
    %113 = vmatprep.subr.bf16.mxu0 0
    %114 = vmatpush1.bf16.msra.mxu0 %v91
    %115 = vmatprep.subr.bf16.mxu0 0
    %116 = vmatpush2.bf16.msra.mxu0 0
    %117 = vmatprep.subr.bf16.mxu0 0
    %118 = vmatpush2.bf16.msra.mxu0 0
    %119 = vmatprep.subr.bf16.mxu0 0
    %120 = vmatpush2.bf16.msra.mxu0 0
    %121 = vmatprep.subr.bf16.mxu0 0
    %122 = vmatpush2.bf16.msra.mxu0 0
    %123 = vmatprep.subr.bf16.mxu0 0
    %124 = vmatpush2.bf16.msra.mxu0 0
    %125 = vmatprep.subr.bf16.mxu0 0
    %126 = vmatpush2.bf16.msra.mxu0 0
    %127 = vmatprep.subr.bf16.mxu0 0
    %128 = vmatpush2.bf16.msra.mxu0 0
    %129 = vmatprep.subr.bf16.mxu0 0
    %130 = vmatpush2.bf16.msra.mxu0 0
    %131 = vmatprep.mubr.bf16.mxu0 0
    %132 = vmatmul.mubr.bf16.gmra.mxu0 %v97
    %v133 = vpop.f32.mrf.mxu0
    %v134 = vadd.f32 %v81, %v133
    %v135 = vpop.f32.mrf.mxu0
    %v136 = vpop.f32.mrf.mxu0
    %v137 = vadd.f32 %v81, %v136
    %v138 = vpop.f32.mrf.mxu0
    %139 = vdwg.mxu0
    %v140 = vmul.f32 %v134, 0.5
    %v141 = vmul.f32 %v137, 0.5
    %v142 = vmul.f32 %v134, 0.70710677
    %v143 = vmul.f32 %v137, 0.70710677
    %vm144 = vcmp.ge.f32.partialorder %v142, 0.0
    %vm145 = vcmp.ge.f32.partialorder %v143, 0.0
    %v146 = vsel %vm144, 1.0, -1.0
    %v147 = vsel %vm145, 1.0, -1.0
    %v148 = vand.u32 2147483647, %v142
    %v149 = vand.u32 2147483647, %v143
    %v150 = vmul.f32 %v148, 0.3275911
    %v151 = vmul.f32 %v149, 0.3275911
    %v152 = vadd.f32 %v150, 1.0
    %v153 = vadd.f32 %v151, 1.0
    %v154 = vrcp.pop %v152
    %v155 = vrcp.pop %v153
    %v156 = vmul.f32 %v154, 1.0614054
    %v157 = vmul.f32 %v155, 1.0614054
    %v158 = vadd.f32 %v156, -1.4531521
    %v159 = vadd.f32 %v157, -1.4531521
    %v160 = vmul.f32 %v158, %v154
    %v161 = vmul.f32 %v159, %v155
    %v162 = vadd.f32 %v160, 1.4214138
    %v163 = vadd.f32 %v161, 1.4214138
    %v164 = vmul.f32 %v162, %v154
    %v165 = vmul.f32 %v163, %v155
    %v166 = vadd.f32 %v164, -0.28449672
    %v167 = vadd.f32 %v165, -0.28449672
    %v168 = vmul.f32 %v166, %v154
    %v169 = vmul.f32 %v167, %v155
    %v170 = vadd.f32 %v168, 0.2548296
    %v171 = vadd.f32 %v169, 0.2548296
    %v172 = vmul.f32 %v170, %v154
    %v173 = vmul.f32 %v171, %v155
    %v174 = vsub.f32 0.0, %v148
    %v175 = vsub.f32 0.0, %v149
    %v176 = vmul.f32 %v174, %v148
    %v177 = vmul.f32 %v175, %v149
    %v178 = vmul.f32 %v176, 1.442695
    %v179 = vpow.pop %v178
    %v180 = vmul.f32 %v177, 1.442695
    %v181 = vpow.pop %v180
    %v182 = vmul.f32 %v172, %v179
    %v183 = vmul.f32 %v173, %v181
    %v184 = vsub.f32 1.0, %v182
    %v185 = vsub.f32 1.0, %v183
    %v186 = vmul.f32 %v146, %v184
    %v187 = vmul.f32 %v147, %v185
    %v188 = vadd.f32 %v186, 1.0
    %v189 = vadd.f32 %v187, 1.0
    %v190 = vmul.f32 %v140, %v188
    %v191 = vmul.f32 %v141, %v189
    %v192 = vld [vmem:[#allocation2] sm:$0xff]
    %v193 = vld [vmem:[#allocation2 + $0x8] sm:$0xff]
    %v194 = vpack.c.bf16 %v191, %v190
    %v195 = vld [vmem:[#allocation8] sm:$0xf]
    %v196 = vld [vmem:[#allocation8 + $0x4] sm:$0xf]
    %v197 = vld [vmem:[#allocation8 + $0x8] sm:$0xf]
    %v198 = vld [vmem:[#allocation8 + $0xc] sm:$0xf]
    %v199 = vld [vmem:[#allocation8 + $0x10] sm:$0xf]
    %v200 = vld [vmem:[#allocation8 + $0x14] sm:$0xf]
    %v201 = vld [vmem:[#allocation8 + $0x18] sm:$0xf]
    %v202 = vld [vmem:[#allocation8 + $0x1c] sm:$0xf]
    %v203 = vld [vmem:[#allocation8 + $0x20] sm:$0xf]
    %v204 = vld [vmem:[#allocation8 + $0x24] sm:$0xf]
    %v205 = vld [vmem:[#allocation8 + $0x28] sm:$0xf]
    %v206 = vld [vmem:[#allocation8 + $0x2c] sm:$0xf]
    %v207 = vld [vmem:[#allocation8 + $0x30] sm:$0xf]
    %v208 = vld [vmem:[#allocation8 + $0x34] sm:$0xf]
    %v209 = vld [vmem:[#allocation8 + $0x38] sm:$0xf]
    %v210 = vld [vmem:[#allocation8 + $0x3c] sm:$0xf]
    %v227 = vunpack.c.l.b16 %v195
    %v228 = vunpack.c.l.b16 %v196
    %v229 = vunpack.c.l.b16 %v197
    %v230 = vunpack.c.l.b16 %v198
    %v231 = vunpack.c.l.b16 %v199
    %v232 = vunpack.c.l.b16 %v200
    %v233 = vunpack.c.l.b16 %v201
    %v234 = vunpack.c.l.b16 %v202
    %v235 = vunpack.c.l.b16 %v203
    %v236 = vunpack.c.l.b16 %v204
    %v237 = vunpack.c.l.b16 %v205
    %v238 = vunpack.c.l.b16 %v206
    %v239 = vunpack.c.l.b16 %v207
    %v240 = vunpack.c.l.b16 %v208
    %v241 = vunpack.c.l.b16 %v209
    %v242 = vunpack.c.l.b16 %v210
    %v243 = vpack.c.b16 %v228, %v227
    %v244 = vpack.c.b16 %v230, %v229
    %v245 = vpack.c.b16 %v232, %v231
    %v246 = vpack.c.b16 %v234, %v233
    %v247 = vpack.c.b16 %v236, %v235
    %v248 = vpack.c.b16 %v238, %v237
    %v249 = vpack.c.b16 %v240, %v239
    %v250 = vpack.c.b16 %v242, %v241
    %259 = vmatprep.subr.bf16.mxu0 0
    %260 = vmatpush1.bf16.msra.mxu0 %v250
    %261 = vmatprep.subr.bf16.mxu0 0
    %262 = vmatpush1.bf16.msra.mxu0 %v249
    %263 = vmatprep.subr.bf16.mxu0 0
    %264 = vmatpush1.bf16.msra.mxu0 %v248
    %265 = vmatprep.subr.bf16.mxu0 0
    %266 = vmatpush1.bf16.msra.mxu0 %v247
    %267 = vmatprep.subr.bf16.mxu0 0
    %268 = vmatpush1.bf16.msra.mxu0 %v246
    %269 = vmatprep.subr.bf16.mxu0 0
    %270 = vmatpush1.bf16.msra.mxu0 %v245
    %271 = vmatprep.subr.bf16.mxu0 0
    %272 = vmatpush1.bf16.msra.mxu0 %v244
    %273 = vmatprep.subr.bf16.mxu0 0
    %274 = vmatpush1.bf16.msra.mxu0 %v243
    %275 = vmatprep.subr.bf16.mxu0 0
    %276 = vmatpush2.bf16.msra.mxu0 0
    %277 = vmatprep.subr.bf16.mxu0 0
    %278 = vmatpush2.bf16.msra.mxu0 0
    %279 = vmatprep.subr.bf16.mxu0 0
    %280 = vmatpush2.bf16.msra.mxu0 0
    %281 = vmatprep.subr.bf16.mxu0 0
    %282 = vmatpush2.bf16.msra.mxu0 0
    %283 = vmatprep.subr.bf16.mxu0 0
    %284 = vmatpush2.bf16.msra.mxu0 0
    %285 = vmatprep.subr.bf16.mxu0 0
    %286 = vmatpush2.bf16.msra.mxu0 0
    %287 = vmatprep.subr.bf16.mxu0 0
    %288 = vmatpush2.bf16.msra.mxu0 0
    %289 = vmatprep.subr.bf16.mxu0 0
    %290 = vmatpush2.bf16.msra.mxu0 0
    %291 = vmatprep.mubr.bf16.mxu0 0
    %292 = vmatmul.mubr.bf16.gmra.mxu0 %v194
    %v293 = vpop.f32.mrf.mxu0
    %v294 = vadd.f32 0.0, %v293
    %v295 = vpop.f32.mrf.mxu0
    %v296 = vpop.f32.mrf.mxu0
    %v297 = vadd.f32 0.0, %v296
    %v298 = vpop.f32.mrf.mxu0
    %299 = vdwg.mxu0
    %v300 = vadd.f32 %v192, %v294
    %v301 = vadd.f32 %v193, %v297
    %302 = vst [vmem:[#allocation2] sm:$0xff] %v300
    %303 = vst [vmem:[#allocation2 + $0x8] sm:$0xff] %v301
    // Predicated region
    $region38: #{tpu_custom_call.1} parent=1 // pred_check
      %p304 = pneg %p63
    $region39: #{tpu_custom_call.1} parent=1 // pred_check_branch
      %306 = sbr.rel (%p304) target = $region41
    $region40: #{tpu_custom_call.1} parent=1 // pred_region
      %v307 = vld [vmem:[#allocation2] sm:$0xff]
      %v308 = vld [vmem:[#allocation2 + $0x8] sm:$0xff]
      %v309 = vld [vmem:[%s4] sm:$0x1]
      %v311 = vlaneseq
      %v312 = vshrl.u32 %v311, 7
      %v313 = vsub.s32 0, %v312
      %v314 = vrot.slane %v309, %v313
      %v316 = vadd.f32 %v307, %v314
      %v317 = vadd.f32 %v308, %v314
      %318 = vst [vmem:[#allocation9] sm:$0xff] %v316
      %319 = vst [vmem:[#allocation9 + $0x8] sm:$0xff] %v317
    $region41: #{tpu_custom_call.1} parent=1 // pred_fallthru
      _
    // Predicated region
    $region42: #{tpu_custom_call.1} parent=1 // pred_check
      _
    $region43: #{tpu_custom_call.1} parent=1 // pred_check_branch
      %321 = sbr.rel (0) target = $region45
    $region44: #{tpu_custom_call.1} parent=1 // pred_region
      %s323 = ssub.s32 256, 256
      %324 = vsyncadd [#allocation5], %s323
      %s325 = sshll.u32 [#allocation9], 4
      %s326 = int_to_ptr.vmem [resolvable:$true] %s325
      %331 = dma.vmem_to_hbm [thread:$0]  %s326, 256, %s5, [#allocation5], 128, 128, 8
    $region45: #{tpu_custom_call.1} parent=1 // pred_fallthru
      _
    // Predicated region
    $region46: #{tpu_custom_call.1} parent=1 // pred_check
      _
    $region47: #{tpu_custom_call.1} parent=1 // pred_check_branch
      %333 = sbr.rel (0) target = $region49
    $region48: #{tpu_custom_call.1} parent=1 // pred_region
      %334 = dma.done [#allocation5], 256
    $region49: #{tpu_custom_call.1} parent=1 // pred_fallthru
      _
    %335 = vsyncpa [#allocation4], 1
    %336 = vsyncpa [#allocation7], 1
    %337 = vsyncpa [#allocation5], 1

</llo_original>
